<compile_context>
chip_gen: v7x
topology: tpu7x:2x2x1
jax: 0.10.0
libtpu: 0.0.40
codegen_flags: <defaults>
</compile_context>

<pallas_src>
import jax
import jax.numpy as jnp
from jax.experimental import pallas as pl
from jax.experimental.pallas import tpu as pltpu


def smlp_kernel(x_ref, wf_ref, ah_ref, aw_ref, bias_ref, o_ref):
    # x: (N, H*W) bf16 slab, N = Bt*C rows (Bt images, C channels each).
    x = x_ref[...]

    # Channel fuse first (block-diagonal over the Bt images in the tile).
    # wf_ref is (3, N, N); leading-dim indexing is free (no lane slicing).
    y1 = jnp.dot(wf_ref[0], x, preferred_element_type=jnp.float32).astype(jnp.bfloat16)
    y2 = jnp.dot(wf_ref[1], x, preferred_element_type=jnp.float32).astype(jnp.bfloat16)
    y3 = jnp.dot(wf_ref[2], x, preferred_element_type=jnp.float32)

    # Spatial mixes as lane-dense (H*W x H*W) matmuls — no relayouts.
    #   ah = kron(Wh, I_W)^T applies proj_h along H; aw = kron(I_H, Ww)^T along W.
    out = (jnp.dot(y1, ah_ref[...], preferred_element_type=jnp.float32)
           + jnp.dot(y2, aw_ref[...], preferred_element_type=jnp.float32)
           + y3
           + bias_ref[...])          # pre-folded proj_h/proj_w/fuse biases (f32)

    o_ref[...] = out.astype(o_ref.dtype)


def _pick_bt(B, C, HW, itemsize, budget_bytes=8 << 20):
    """Largest batch tile with sublane-aligned rows (Bt*C % 8 == 0, or full
    batch) whose double-buffered in+out blocks fit a conservative VMEM budget
    (safe on v7x's 64 MiB as well as v5e/v6e)."""
    cands = []
    for bt in range(1, B + 1):
        if B % bt:
            continue
        rows = bt * C
        aligned = (rows % 8 == 0) or (bt == B)
        fits = rows * HW * (itemsize + 4) * 2 <= budget_bytes
        if aligned and fits:
            cands.append(bt)
    return max(cands) if cands else B


def smlp_block(x, wh, bh, ww, bw, wf, bf):
    B, C, H, W = x.shape
    HW = H * W
    out_dtype = x.dtype
    f32 = jnp.float32

    wh = wh.astype(f32)
    ww = ww.astype(f32)
    wf = wf.astype(f32)
    bh = bh.astype(f32)
    bw = bw.astype(f32)
    bf = bf.astype(f32)

    bt = _pick_bt(B, C, HW, jnp.dtype(jnp.bfloat16).itemsize)
    n = bt * C
    grid = (B // bt,)

    # Split fuse.weight outside the kernel (columns: [x_h | x_w | x_id]) and
    # build block-diagonal channel operators for the Bt images in a tile.
    wf1, wf2, wf3 = wf[:, :C], wf[:, C:2 * C], wf[:, 2 * C:]
    eye_bt = jnp.eye(bt, dtype=f32)
    wf_blk = jnp.stack([jnp.kron(eye_bt, wf1),
                        jnp.kron(eye_bt, wf2),
                        jnp.kron(eye_bt, wf3)]).astype(jnp.bfloat16)     # (3, n, n)

    # Lane-dense spatial-mix operators on the flattened p = h*W + w axis.
    ah_t = jnp.kron(wh.T, jnp.eye(W, dtype=f32)).astype(jnp.bfloat16)    # (HW, HW)
    aw_t = jnp.kron(jnp.eye(H, dtype=f32), ww.T).astype(jnp.bfloat16)    # (HW, HW)

    # Pre-folded bias plane: fuse(proj_h.bias) + fuse(proj_w.bias) + fuse.bias.
    bh_big = jnp.repeat(bh, W)                      # bh[h] at p = h*W + w
    bw_big = jnp.tile(bw, H)                        # bw[w] at p = h*W + w
    s1 = wf1.sum(axis=1)                            # (C,)
    s2 = wf2.sum(axis=1)                            # (C,)
    bias_c = (s1[:, None] * bh_big[None, :]
              + s2[:, None] * bw_big[None, :]
              + bf[:, None])                        # (C, HW) f32
    bias_blk = jnp.tile(bias_c, (bt, 1))            # (n, HW) f32

    # Lane-dense bf16 activation slab (B*C rows, H*W = multiple of 128 lanes).
    x2 = x.reshape(B * C, HW).astype(jnp.bfloat16)

    flops = int(2 * B * C * H * W * (H + W + 3 * C))
    bytes_accessed = int(B * C * HW * (2 + 4)                 # x (bf16) + out (f32)
                         + 2 * HW * HW * 2                    # mix operators (bf16)
                         + 3 * n * n * 2 + n * HW * 4)        # wf blocks + bias plane

    out2 = pl.pallas_call(
        smlp_kernel,
        out_shape=jax.ShapeDtypeStruct((B * C, HW), out_dtype),
        grid_spec=pltpu.PrefetchScalarGridSpec(
            num_scalar_prefetch=0,
            grid=grid,
            in_specs=[
                pl.BlockSpec((n, HW), lambda i: (i, 0)),
                pl.BlockSpec((3, n, n), lambda i: (0, 0, 0)),
                pl.BlockSpec((HW, HW), lambda i: (0, 0)),
                pl.BlockSpec((HW, HW), lambda i: (0, 0)),
                pl.BlockSpec((n, HW), lambda i: (0, 0)),
            ],
            out_specs=pl.BlockSpec((n, HW), lambda i: (i, 0)),
        ),
        compiler_params=pltpu.CompilerParams(
            dimension_semantics=("parallel",),
            vmem_limit_bytes=32 * 1024 * 1024),
        cost_estimate=pl.CostEstimate(
            flops=flops, transcendentals=0, bytes_accessed=bytes_accessed),
    )(x2, wf_blk, ah_t, aw_t, bias_blk)

    return out2.reshape(B, C, H, W)


def smlp_ref(x, wh, bh, ww, bw, wf, bf):
    # Pure-JAX f32 reference reproducing the PyTorch forward exactly (NCHW).
    x_h = jnp.einsum('hk,bckw->bchw', wh, x) + bh[None, None, :, None]
    x_w = jnp.einsum('wk,bchk->bchw', ww, x) + bw[None, None, None, :]
    x_fuse = jnp.concatenate([x_h, x_w, x], axis=1)
    out = jnp.einsum('ck,bkhw->bchw', wf, x_fuse) + bf[None, :, None, None]
    return out


if __name__ == "__main__":
    # Small shapes consistent with sMLPBlock(h=H, w=W, c=C); input is NCHW.
    B, C, H, W = 2, 4, 16, 16

    key = jax.random.PRNGKey(0)
    kx, k1, k2, k3, k4, k5, k6 = jax.random.split(key, 7)

    x = jax.random.normal(kx, (B, C, H, W), dtype=jnp.float32)

    # Deterministic nn.Linear-style init: U(-1/sqrt(fan_in), 1/sqrt(fan_in)).
    sh = 1.0 / (H ** 0.5)
    sw = 1.0 / (W ** 0.5)
    sf = 1.0 / ((3 * C) ** 0.5)
    wh = jax.random.uniform(k1, (H, H), jnp.float32, -sh, sh)       # proj_h.weight
    bh = jax.random.uniform(k2, (H,), jnp.float32, -sh, sh)         # proj_h.bias
    ww = jax.random.uniform(k3, (W, W), jnp.float32, -sw, sw)       # proj_w.weight
    bw = jax.random.uniform(k4, (W,), jnp.float32, -sw, sw)         # proj_w.bias
    wf = jax.random.uniform(k5, (C, 3 * C), jnp.float32, -sf, sf)   # fuse.weight
    bf = jax.random.uniform(k6, (C,), jnp.float32, -sf, sf)         # fuse.bias

    out = jax.block_until_ready(smlp_block(x, wh, bh, ww, bw, wf, bf))
    ref = smlp_ref(x, wh, bh, ww, bw, wf, bf)

    assert out.shape == (B, C, H, W)
    # bf16 MXU operands with f32 accumulation -> loosened tolerance vs f32 ref.
    assert jnp.allclose(out, ref, atol=3e-2, rtol=3e-2), "mismatch vs reference"

    print("KERNEL_OK")
</pallas_src>

<mosaic_0001>
module attributes {stable_mosaic.version = 11 : i64} {
  func.func @smlp_kernel(%arg0: i32, %arg1: memref<8x256xbf16, #tpu.memory_space<vmem>>, %arg2: memref<3x8x8xbf16, #tpu.memory_space<vmem>>, %arg3: memref<256x256xbf16, #tpu.memory_space<vmem>>, %arg4: memref<256x256xbf16, #tpu.memory_space<vmem>>, %arg5: memref<8x256xf32, #tpu.memory_space<vmem>>, %arg6: memref<8x256xf32, #tpu.memory_space<vmem>>) attributes {dimension_semantics = [#tpu.dimension_semantics<parallel>], iteration_bounds = array<i64: 1>, scalar_prefetch = 0 : i64, scratch_operands = 0 : i64, tpu.core_type = #tpu.core_type<tc>, window_params = [{transform_indices = @transform_0, window_bounds = array<i64: 8, 256>}, {pipeline_mode = #tpu.pipeline_mode<synchronous>, transform_indices = @transform_1, window_bounds = array<i64: 3, 8, 8>}, {pipeline_mode = #tpu.pipeline_mode<synchronous>, transform_indices = @transform_2, window_bounds = array<i64: 256, 256>}, {pipeline_mode = #tpu.pipeline_mode<synchronous>, transform_indices = @transform_3, window_bounds = array<i64: 256, 256>}, {pipeline_mode = #tpu.pipeline_mode<synchronous>, transform_indices = @transform_4, window_bounds = array<i64: 8, 256>}, {transform_indices = @transform_5, window_bounds = array<i64: 8, 256>}]} {
    %c0 = arith.constant 0 : index
    %c0_0 = arith.constant 0 : index
    %0 = vector.load %arg1[%c0, %c0_0] : memref<8x256xbf16, #tpu.memory_space<vmem>>, vector<8x256xbf16>
    %c0_1 = arith.constant 0 : index
    %c0_2 = arith.constant 0 : index
    %c0_3 = arith.constant 0 : index
    %1 = vector.load %arg2[%c0_1, %c0_2, %c0_3] : memref<3x8x8xbf16, #tpu.memory_space<vmem>>, vector<1x8x8xbf16>
    %2 = vector.shape_cast %1 : vector<1x8x8xbf16> to vector<8x8xbf16>
    %cst = arith.constant dense<0.000000e+00> : vector<8x256xf32>
    %3 = tpu.matmul %2, %0, %cst {dimension_numbers = #tpu.dot_dimension_numbers<[1], [0], [0], [1], [0, 0, 1, 1], [], []>} : vector<8x8xbf16>, vector<8x256xbf16>, vector<8x256xf32> -> vector<8x256xf32>
    %4 = arith.truncf %3 : vector<8x256xf32> to vector<8x256xbf16>
    %c1 = arith.constant 1 : index
    %c0_4 = arith.constant 0 : index
    %c0_5 = arith.constant 0 : index
    %5 = vector.load %arg2[%c1, %c0_4, %c0_5] : memref<3x8x8xbf16, #tpu.memory_space<vmem>>, vector<1x8x8xbf16>
    %6 = vector.shape_cast %5 : vector<1x8x8xbf16> to vector<8x8xbf16>
    %cst_6 = arith.constant dense<0.000000e+00> : vector<8x256xf32>
    %7 = tpu.matmul %6, %0, %cst_6 {dimension_numbers = #tpu.dot_dimension_numbers<[1], [0], [0], [1], [0, 0, 1, 1], [], []>} : vector<8x8xbf16>, vector<8x256xbf16>, vector<8x256xf32> -> vector<8x256xf32>
    %8 = arith.truncf %7 : vector<8x256xf32> to vector<8x256xbf16>
    %c2 = arith.constant 2 : index
    %c0_7 = arith.constant 0 : index
    %c0_8 = arith.constant 0 : index
    %9 = vector.load %arg2[%c2, %c0_7, %c0_8] : memref<3x8x8xbf16, #tpu.memory_space<vmem>>, vector<1x8x8xbf16>
    %10 = vector.shape_cast %9 : vector<1x8x8xbf16> to vector<8x8xbf16>
    %cst_9 = arith.constant dense<0.000000e+00> : vector<8x256xf32>
    %11 = tpu.matmul %10, %0, %cst_9 {dimension_numbers = #tpu.dot_dimension_numbers<[1], [0], [0], [1], [0, 0, 1, 1], [], []>} : vector<8x8xbf16>, vector<8x256xbf16>, vector<8x256xf32> -> vector<8x256xf32>
    %c0_10 = arith.constant 0 : index
    %c0_11 = arith.constant 0 : index
    %12 = vector.load %arg3[%c0_10, %c0_11] : memref<256x256xbf16, #tpu.memory_space<vmem>>, vector<256x256xbf16>
    %cst_12 = arith.constant dense<0.000000e+00> : vector<8x256xf32>
    %13 = tpu.matmul %4, %12, %cst_12 {dimension_numbers = #tpu.dot_dimension_numbers<[1], [0], [0], [1], [0, 0, 1, 1], [], []>} : vector<8x256xbf16>, vector<256x256xbf16>, vector<8x256xf32> -> vector<8x256xf32>
    %c0_13 = arith.constant 0 : index
    %c0_14 = arith.constant 0 : index
    %14 = vector.load %arg4[%c0_13, %c0_14] : memref<256x256xbf16, #tpu.memory_space<vmem>>, vector<256x256xbf16>
    %cst_15 = arith.constant dense<0.000000e+00> : vector<8x256xf32>
    %15 = tpu.matmul %8, %14, %cst_15 {dimension_numbers = #tpu.dot_dimension_numbers<[1], [0], [0], [1], [0, 0, 1, 1], [], []>} : vector<8x256xbf16>, vector<256x256xbf16>, vector<8x256xf32> -> vector<8x256xf32>
    %16 = arith.addf %13, %15 : vector<8x256xf32>
    %17 = arith.addf %16, %11 : vector<8x256xf32>
    %c0_16 = arith.constant 0 : index
    %c0_17 = arith.constant 0 : index
    %18 = vector.load %arg5[%c0_16, %c0_17] : memref<8x256xf32, #tpu.memory_space<vmem>>, vector<8x256xf32>
    %19 = arith.addf %17, %18 : vector<8x256xf32>
    %c0_18 = arith.constant 0 : index
    %c0_19 = arith.constant 0 : index
    %20 = vector.load %arg6[%c0_18, %c0_19] : memref<8x256xf32, #tpu.memory_space<vmem>>, vector<8x256xf32>
    tpu.vector_store %arg6[%c0_18, %c0_19], %19 {strides = array<i32>} : memref<8x256xf32, #tpu.memory_space<vmem>>, vector<8x256xf32>,
    return
  }
  func.func @transform_0(%arg0: i32) -> (i32, i32) {
    %c0_i32 = arith.constant 0 : i32
    %c0_i32_0 = arith.constant 0 : i32
    return %arg0, %c0_i32 : i32, i32
  }
  func.func @transform_1(%arg0: i32) -> (i32, i32, i32) {
    %c0_i32 = arith.constant 0 : i32
    %c0_i32_0 = arith.constant 0 : i32
    %c0_i32_1 = arith.constant 0 : i32
    %c0_i32_2 = arith.constant 0 : i32
    return %c0_i32, %c0_i32_0, %c0_i32_1 : i32, i32, i32
  }
  func.func @transform_2(%arg0: i32) -> (i32, i32) {
    %c0_i32 = arith.constant 0 : i32
    %c0_i32_0 = arith.constant 0 : i32
    %c0_i32_1 = arith.constant 0 : i32
    return %c0_i32, %c0_i32_0 : i32, i32
  }
  func.func @transform_3(%arg0: i32) -> (i32, i32) {
    %c0_i32 = arith.constant 0 : i32
    %c0_i32_0 = arith.constant 0 : i32
    %c0_i32_1 = arith.constant 0 : i32
    return %c0_i32, %c0_i32_0 : i32, i32
  }
  func.func @transform_4(%arg0: i32) -> (i32, i32) {
    %c0_i32 = arith.constant 0 : i32
    %c0_i32_0 = arith.constant 0 : i32
    %c0_i32_1 = arith.constant 0 : i32
    return %c0_i32, %c0_i32_0 : i32, i32
  }
  func.func @transform_5(%arg0: i32) -> (i32, i32) {
    %c0_i32 = arith.constant 0 : i32
    %c0_i32_0 = arith.constant 0 : i32
    return %arg0, %c0_i32 : i32, i32
  }
}

</mosaic_0001>

<llo_original>
// kernel: tpu_custom_call.1
$region0: #{tpu_custom_call.1}
  #allocation0 [shape = 'u32[]', space=smem, size = 0x4, offset = 0x4, fixed_abs, tag = 'smem constant byte address 0x4 - core index']
  #allocation1 [shape = 'u32[144,128]{1,0:T(1,128)}', space=vmem, size = 0x12000, scoped, tag = 'internal scratch']
  %s0 = inlined_call_operand.hbm [shape: bf16[8,256], index: 0, kind: input, shape index: {}]
  %s1 = inlined_call_operand.hbm [shape: bf16[3,8,8], index: 1, kind: input, shape index: {}]
  %s2 = inlined_call_operand.hbm [shape: bf16[256,256], index: 2, kind: input, shape index: {}]
  %s3 = inlined_call_operand.hbm [shape: bf16[256,256], index: 3, kind: input, shape index: {}]
  %s4 = inlined_call_operand.hbm [shape: f32[8,256], index: 4, kind: input, shape index: {}]
  %s5 = inlined_call_operand.hbm [shape: f32[8,256], index: 5, kind: output, shape index: {}]
  %s6 = sld [smem:[#allocation0]]
  $region50: #{tpu_custom_call.1} parent=0
    _
  %s8 = ssub.s32 1, %s6
  %s9 = scalar_select 0, %s8, %s6
  $region1: #{tpu_custom_call.1} parent=0
    #allocation2 [shape = 'u8[4096]{0}', space=vmem, size = 0x1000, scoped, tag = 'input window, operand 0, single buffered']
    #allocation3 [shape = 's32[1]{0}', space=sflag, size = 0x4, scoped, tag = 'scoped memory for tpu_custom_call.1']
    #allocation4 [shape = 's32[1]{0}', space=sflag, size = 0x4, scoped, tag = 'scoped memory for tpu_custom_call.1']
    #allocation5 [shape = 'u8[6144]{0}', space=vmem, size = 0x1800, scoped, tag = 'input window, operand 1, single buffered']
    #allocation6 [shape = 's32[1]{0}', space=sflag, size = 0x4, scoped, tag = 'scoped memory for tpu_custom_call.1']
    #allocation7 [shape = 'u8[131072]{0}', space=vmem, size = 0x20000, scoped, tag = 'input window, operand 2, single buffered']
    #allocation8 [shape = 'u8[131072]{0}', space=vmem, size = 0x20000, scoped, tag = 'input window, operand 3, single buffered']
    #allocation9 [shape = 's32[1]{0}', space=sflag, size = 0x4, scoped, tag = 'scoped memory for tpu_custom_call.1']
    #allocation10 [shape = 'u8[8192]{0}', space=vmem, size = 0x2000, scoped, tag = 'input window, operand 4, single buffered']
    #allocation11 [shape = 'u8[8192]{0}', space=vmem, size = 0x2000, scoped, tag = 'output window, operand 0, single buffered']
    %10 = vsyncpa [#allocation3], 0
    %11 = vsyncpa [#allocation6], 0
    %12 = vsyncpa [#allocation9], 0
    %13 = vsyncpa [#allocation4], 0
    // Predicated region
    $region2: #{tpu_custom_call.1} parent=1 // pred_check
      _
    $region3: #{tpu_custom_call.1} parent=1 // pred_check_branch
      %15 = sbr.rel (0) target = $region5
    $region4: #{tpu_custom_call.1} parent=1 // pred_region
      %s17 = ssub.s32 128, 128
      %18 = vsyncadd [#allocation3], %s17
      %s20 = sshll.u32 [#allocation2], 4
      %s21 = int_to_ptr.vmem [resolvable:$true] %s20
      %23 = dma.hbm_to_vmem [thread:$0]  %s0, 128, %s21, [#allocation3]
    $region5: #{tpu_custom_call.1} parent=1 // pred_fallthru
      _
    // Predicated region
    $region6: #{tpu_custom_call.1} parent=1 // pred_check
      _
    $region7: #{tpu_custom_call.1} parent=1 // pred_check_branch
      %25 = sbr.rel (0) target = $region9
    $region8: #{tpu_custom_call.1} parent=1 // pred_region
      %s27 = ssub.s32 192, 192
      %28 = vsyncadd [#allocation6], %s27
      %s29 = sshll.u32 [#allocation5], 4
      %s30 = int_to_ptr.vmem [resolvable:$true] %s29
      %35 = dma.hbm_to_vmem [thread:$0]  %s1, 192, %s30, [#allocation6], 64, 64, 4
    $region9: #{tpu_custom_call.1} parent=1 // pred_fallthru
      _
    // Predicated region
    $region10: #{tpu_custom_call.1} parent=1 // pred_check
      _
    $region11: #{tpu_custom_call.1} parent=1 // pred_check_branch
      %37 = sbr.rel (0) target = $region13
    $region12: #{tpu_custom_call.1} parent=1 // pred_region
      %s39 = ssub.s32 4096, 4096
      %40 = vsyncadd [#allocation6], %s39
      %s41 = sshll.u32 [#allocation7], 4
      %s42 = int_to_ptr.vmem [resolvable:$true] %s41
      %47 = dma.hbm_to_vmem [thread:$0]  %s2, 4096, %s42, [#allocation6], 128, 128, 8
    $region13: #{tpu_custom_call.1} parent=1 // pred_fallthru
      _
    // Predicated region
    $region14: #{tpu_custom_call.1} parent=1 // pred_check
      _
    $region15: #{tpu_custom_call.1} parent=1 // pred_check_branch
      %49 = sbr.rel (0) target = $region17
    $region16: #{tpu_custom_call.1} parent=1 // pred_region
      %s51 = ssub.s32 4096, 4096
      %52 = vsyncadd [#allocation9], %s51
      %s53 = sshll.u32 [#allocation8], 4
      %s54 = int_to_ptr.vmem [resolvable:$true] %s53
      %59 = dma.hbm_to_vmem [thread:$0]  %s3, 4096, %s54, [#allocation9], 128, 128, 8
    $region17: #{tpu_custom_call.1} parent=1 // pred_fallthru
      _
    // Predicated region
    $region18: #{tpu_custom_call.1} parent=1 // pred_check
      _
    $region19: #{tpu_custom_call.1} parent=1 // pred_check_branch
      %61 = sbr.rel (0) target = $region21
    $region20: #{tpu_custom_call.1} parent=1 // pred_region
      %s63 = ssub.s32 256, 256
      %64 = vsyncadd [#allocation9], %s63
      %s66 = sshll.u32 [#allocation10], 4
      %s67 = int_to_ptr.vmem [resolvable:$true] %s66
      %69 = dma.hbm_to_vmem [thread:$0]  %s4, 256, %s67, [#allocation9]
    $region21: #{tpu_custom_call.1} parent=1 // pred_fallthru
      _
    // Predicated region
    $region22: #{tpu_custom_call.1} parent=1 // pred_check
      _
    $region23: #{tpu_custom_call.1} parent=1 // pred_check_branch
      %71 = sbr.rel (0) target = $region25
    $region24: #{tpu_custom_call.1} parent=1 // pred_region
      %72 = dma.done [#allocation3], 128
    $region25: #{tpu_custom_call.1} parent=1 // pred_fallthru
      _
    // Predicated region
    $region26: #{tpu_custom_call.1} parent=1 // pred_check
      _
    $region27: #{tpu_custom_call.1} parent=1 // pred_check_branch
      %74 = sbr.rel (0) target = $region29
    $region28: #{tpu_custom_call.1} parent=1 // pred_region
      %75 = dma.done [#allocation6], 192
    $region29: #{tpu_custom_call.1} parent=1 // pred_fallthru
      _
    // Predicated region
    $region30: #{tpu_custom_call.1} parent=1 // pred_check
      _
    $region31: #{tpu_custom_call.1} parent=1 // pred_check_branch
      %77 = sbr.rel (0) target = $region33
    $region32: #{tpu_custom_call.1} parent=1 // pred_region
      %78 = dma.done [#allocation6], 4096
    $region33: #{tpu_custom_call.1} parent=1 // pred_fallthru
      _
    // Predicated region
    $region34: #{tpu_custom_call.1} parent=1 // pred_check
      _
    $region35: #{tpu_custom_call.1} parent=1 // pred_check_branch
      %80 = sbr.rel (0) target = $region37
    $region36: #{tpu_custom_call.1} parent=1 // pred_region
      %81 = dma.done [#allocation9], 4096
    $region37: #{tpu_custom_call.1} parent=1 // pred_fallthru
      _
    // Predicated region
    $region38: #{tpu_custom_call.1} parent=1 // pred_check
      _
    $region39: #{tpu_custom_call.1} parent=1 // pred_check_branch
      %83 = sbr.rel (0) target = $region41
    $region40: #{tpu_custom_call.1} parent=1 // pred_region
      %84 = dma.done [#allocation9], 256
    $region41: #{tpu_custom_call.1} parent=1 // pred_fallthru
      _
    %v86 = vld [vmem:[#allocation2] sm:$0xff]
    %v87 = vld [vmem:[#allocation5] sm:$0xf]
    %v89 = vunpack.c.l.b16 %v86
    %v90 = vunpack.c.h.b16 %v86
    %v91 = vpack.c.b16 %v89, %v89
    %v92 = vpack.c.b16 %v90, %v90
    %vm93 = vcmask 64512
    %v95 = vsel %vm93, %v87, 0
    %vm97 = vcmask 1043456
    %v99 = vsel %vm97, %v91, 0
    %v102 = vsel %vm97, %v92, 0
    %104 = vmatprep.subr.bf16.mxu0 %v102
    %105 = vmatpush1.bf16.msra.mxu0 %v99
    %106 = vmatprep.subr.bf16.mxu0 0
    %107 = vmatpush1.bf16.msra.mxu0 0
    %108 = vmatprep.subr.bf16.mxu0 0
    %109 = vmatpush1.bf16.msra.mxu0 0
    %110 = vmatprep.subr.bf16.mxu0 0
    %111 = vmatpush1.bf16.msra.mxu0 0
    %112 = vmatprep.subr.bf16.mxu0 0
    %113 = vmatpush1.bf16.msra.mxu0 0
    %114 = vmatprep.subr.bf16.mxu0 0
    %115 = vmatpush1.bf16.msra.mxu0 0
    %116 = vmatprep.subr.bf16.mxu0 0
    %117 = vmatpush1.bf16.msra.mxu0 0
    %118 = vmatprep.subr.bf16.mxu0 0
    %119 = vmatpush1.bf16.msra.mxu0 0
    %120 = vmatprep.subr.bf16.mxu0 0
    %121 = vmatpush1.bf16.msra.mxu0 0
    %122 = vmatprep.subr.bf16.mxu0 0
    %123 = vmatpush1.bf16.msra.mxu0 0
    %124 = vmatprep.subr.bf16.mxu0 0
    %125 = vmatpush1.bf16.msra.mxu0 0
    %126 = vmatprep.subr.bf16.mxu0 0
    %127 = vmatpush1.bf16.msra.mxu0 0
    %128 = vmatprep.subr.bf16.mxu0 0
    %129 = vmatpush1.bf16.msra.mxu0 0
    %130 = vmatprep.subr.bf16.mxu0 0
    %131 = vmatpush1.bf16.msra.mxu0 0
    %132 = vmatprep.subr.bf16.mxu0 0
    %133 = vmatpush1.bf16.msra.mxu0 0
    %134 = vmatprep.subr.bf16.mxu0 0
    %135 = vmatpush1.bf16.msra.mxu0 0
    %136 = vmatprep.mubr.bf16.mxu0 0
    %137 = vmatmul.mubr.bf16.gmra.mrb[0].mxu0 %v95
    %v138 = vpop.f32.mrb[0].mxu0
    %v139 = vadd.f32 0.0, %v138
    %v140 = vpop.f32.mrb[0].mxu0
    %v141 = vadd.f32 0.0, %v140
    %v142 = vpop.f32.mrb[0].mxu0
    %v143 = vpop.f32.mrb[0].mxu0
    %144 = vdwg.mxu0
    %v145 = vpack.c.bf16 %v139, %v139
    %v146 = vpack.c.bf16 %v141, %v141
    %s147 = scalar_lea.vmem [#allocation5], 4
    %v148 = vld [vmem:[%s147] sm:$0xf]
    %v150 = vsel %vm93, %v148, 0
    %152 = vmatprep.subr.bf16.mxu0 %v102
    %153 = vmatpush1.bf16.msra.mxu0 %v99
    %154 = vmatprep.subr.bf16.mxu0 0
    %155 = vmatpush1.bf16.msra.mxu0 0
    %156 = vmatprep.subr.bf16.mxu0 0
    %157 = vmatpush1.bf16.msra.mxu0 0
    %158 = vmatprep.subr.bf16.mxu0 0
    %159 = vmatpush1.bf16.msra.mxu0 0
    %160 = vmatprep.subr.bf16.mxu0 0
    %161 = vmatpush1.bf16.msra.mxu0 0
    %162 = vmatprep.subr.bf16.mxu0 0
    %163 = vmatpush1.bf16.msra.mxu0 0
    %164 = vmatprep.subr.bf16.mxu0 0
    %165 = vmatpush1.bf16.msra.mxu0 0
    %166 = vmatprep.subr.bf16.mxu0 0
    %167 = vmatpush1.bf16.msra.mxu0 0
    %168 = vmatprep.subr.bf16.mxu0 0
    %169 = vmatpush1.bf16.msra.mxu0 0
    %170 = vmatprep.subr.bf16.mxu0 0
    %171 = vmatpush1.bf16.msra.mxu0 0
    %172 = vmatprep.subr.bf16.mxu0 0
    %173 = vmatpush1.bf16.msra.mxu0 0
    %174 = vmatprep.subr.bf16.mxu0 0
    %175 = vmatpush1.bf16.msra.mxu0 0
    %176 = vmatprep.subr.bf16.mxu0 0
    %177 = vmatpush1.bf16.msra.mxu0 0
    %178 = vmatprep.subr.bf16.mxu0 0
    %179 = vmatpush1.bf16.msra.mxu0 0
    %180 = vmatprep.subr.bf16.mxu0 0
    %181 = vmatpush1.bf16.msra.mxu0 0
    %182 = vmatprep.subr.bf16.mxu0 0
    %183 = vmatpush1.bf16.msra.mxu0 0
    %184 = vmatprep.mubr.bf16.mxu0 0
    %185 = vmatmul.mubr.bf16.gmra.mrb[0].mxu0 %v150
    %v186 = vpop.f32.mrb[0].mxu0
    %v187 = vadd.f32 0.0, %v186
    %v188 = vpop.f32.mrb[0].mxu0
    %v189 = vadd.f32 0.0, %v188
    %v190 = vpop.f32.mrb[0].mxu0
    %v191 = vpop.f32.mrb[0].mxu0
    %192 = vdwg.mxu0
    %v193 = vpack.c.bf16 %v187, %v187
    %v194 = vpack.c.bf16 %v189, %v189
    %s195 = scalar_lea.vmem [#allocation5], 8
    %v196 = vld [vmem:[%s195] sm:$0xf]
    %v198 = vsel %vm93, %v196, 0
    %200 = vmatprep.subr.bf16.mxu0 %v102
    %201 = vmatpush1.bf16.msra.mxu0 %v99
    %202 = vmatprep.subr.bf16.mxu0 0
    %203 = vmatpush1.bf16.msra.mxu0 0
    %204 = vmatprep.subr.bf16.mxu0 0
    %205 = vmatpush1.bf16.msra.mxu0 0
    %206 = vmatprep.subr.bf16.mxu0 0
    %207 = vmatpush1.bf16.msra.mxu0 0
    %208 = vmatprep.subr.bf16.mxu0 0
    %209 = vmatpush1.bf16.msra.mxu0 0
    %210 = vmatprep.subr.bf16.mxu0 0
    %211 = vmatpush1.bf16.msra.mxu0 0
    %212 = vmatprep.subr.bf16.mxu0 0
    %213 = vmatpush1.bf16.msra.mxu0 0
    %214 = vmatprep.subr.bf16.mxu0 0
    %215 = vmatpush1.bf16.msra.mxu0 0
    %216 = vmatprep.subr.bf16.mxu0 0
    %217 = vmatpush1.bf16.msra.mxu0 0
    %218 = vmatprep.subr.bf16.mxu0 0
    %219 = vmatpush1.bf16.msra.mxu0 0
    %220 = vmatprep.subr.bf16.mxu0 0
    %221 = vmatpush1.bf16.msra.mxu0 0
    %222 = vmatprep.subr.bf16.mxu0 0
    %223 = vmatpush1.bf16.msra.mxu0 0
    %224 = vmatprep.subr.bf16.mxu0 0
    %225 = vmatpush1.bf16.msra.mxu0 0
    %226 = vmatprep.subr.bf16.mxu0 0
    %227 = vmatpush1.bf16.msra.mxu0 0
    %228 = vmatprep.subr.bf16.mxu0 0
    %229 = vmatpush1.bf16.msra.mxu0 0
    %230 = vmatprep.subr.bf16.mxu0 0
    %231 = vmatpush1.bf16.msra.mxu0 0
    %232 = vmatprep.mubr.bf16.mxu0 0
    %233 = vmatmul.mubr.bf16.gmra.mrb[0].mxu0 %v198
    %v234 = vpop.f32.mrb[0].mxu0
    %v235 = vadd.f32 0.0, %v234
    %v236 = vpop.f32.mrb[0].mxu0
    %v237 = vadd.f32 0.0, %v236
    %v238 = vpop.f32.mrb[0].mxu0
    %v239 = vpop.f32.mrb[0].mxu0
    %240 = vdwg.mxu0
    %v241 = vld [vmem:[#allocation7] sm:$0xff]
    %v242 = vld [vmem:[#allocation7 + $0x8] sm:$0xff]
    %v243 = vld [vmem:[#allocation7 + $0x10] sm:$0xff]
    %v244 = vld [vmem:[#allocation7 + $0x18] sm:$0xff]
    %v245 = vld [vmem:[#allocation7 + $0x20] sm:$0xff]
    %v246 = vld [vmem:[#allocation7 + $0x28] sm:$0xff]
    %v247 = vld [vmem:[#allocation7 + $0x30] sm:$0xff]
    %v248 = vld [vmem:[#allocation7 + $0x38] sm:$0xff]
    %v249 = vld [vmem:[#allocation7 + $0x40] sm:$0xff]
    %v250 = vld [vmem:[#allocation7 + $0x48] sm:$0xff]
    %v251 = vld [vmem:[#allocation7 + $0x50] sm:$0xff]
    %v252 = vld [vmem:[#allocation7 + $0x58] sm:$0xff]
    %v253 = vld [vmem:[#allocation7 + $0x60] sm:$0xff]
    %v254 = vld [vmem:[#allocation7 + $0x68] sm:$0xff]
    %v255 = vld [vmem:[#allocation7 + $0x70] sm:$0xff]
    %v256 = vld [vmem:[#allocation7 + $0x78] sm:$0xff]
    %v257 = vld [vmem:[#allocation7 + $0x80] sm:$0xff]
    %v258 = vld [vmem:[#allocation7 + $0x88] sm:$0xff]
    %v259 = vld [vmem:[#allocation7 + $0x90] sm:$0xff]
    %v260 = vld [vmem:[#allocation7 + $0x98] sm:$0xff]
    %v261 = vld [vmem:[#allocation7 + $0xa0] sm:$0xff]
    %v262 = vld [vmem:[#allocation7 + $0xa8] sm:$0xff]
    %v263 = vld [vmem:[#allocation7 + $0xb0] sm:$0xff]
    %v264 = vld [vmem:[#allocation7 + $0xb8] sm:$0xff]
    %v265 = vld [vmem:[#allocation7 + $0xc0] sm:$0xff]
    %v266 = vld [vmem:[#allocation7 + $0xc8] sm:$0xff]
    %v267 = vld [vmem:[#allocation7 + $0xd0] sm:$0xff]
    %v268 = vld [vmem:[#allocation7 + $0xd8] sm:$0xff]
    %v269 = vld [vmem:[#allocation7 + $0xe0] sm:$0xff]
    %v270 = vld [vmem:[#allocation7 + $0xe8] sm:$0xff]
    %v271 = vld [vmem:[#allocation7 + $0xf0] sm:$0xff]
    %v272 = vld [vmem:[#allocation7 + $0xf8] sm:$0xff]
    %v273 = vld [vmem:[#allocation8] sm:$0xff]
    %v274 = vld [vmem:[#allocation8 + $0x8] sm:$0xff]
    %v275 = vld [vmem:[#allocation8 + $0x10] sm:$0xff]
    %v276 = vld [vmem:[#allocation8 + $0x18] sm:$0xff]
    %v277 = vld [vmem:[#allocation8 + $0x20] sm:$0xff]
    %v278 = vld [vmem:[#allocation8 + $0x28] sm:$0xff]
    %v279 = vld [vmem:[#allocation8 + $0x30] sm:$0xff]
    %v280 = vld [vmem:[#allocation8 + $0x38] sm:$0xff]
    %v281 = vld [vmem:[#allocation8 + $0x40] sm:$0xff]
    %v282 = vld [vmem:[#allocation8 + $0x48] sm:$0xff]
    %v283 = vld [vmem:[#allocation8 + $0x50] sm:$0xff]
    %v284 = vld [vmem:[#allocation8 + $0x58] sm:$0xff]
    %v285 = vld [vmem:[#allocation8 + $0x60] sm:$0xff]
    %v286 = vld [vmem:[#allocation8 + $0x68] sm:$0xff]
    %v287 = vld [vmem:[#allocation8 + $0x70] sm:$0xff]
    %v288 = vld [vmem:[#allocation8 + $0x78] sm:$0xff]
    %v289 = vld [vmem:[#allocation8 + $0x80] sm:$0xff]
    %v290 = vld [vmem:[#allocation8 + $0x88] sm:$0xff]
    %v291 = vld [vmem:[#allocation8 + $0x90] sm:$0xff]
    %v292 = vld [vmem:[#allocation8 + $0x98] sm:$0xff]
    %v293 = vld [vmem:[#allocation8 + $0xa0] sm:$0xff]
    %v294 = vld [vmem:[#allocation8 + $0xa8] sm:$0xff]
    %v295 = vld [vmem:[#allocation8 + $0xb0] sm:$0xff]
    %v296 = vld [vmem:[#allocation8 + $0xb8] sm:$0xff]
    %v297 = vld [vmem:[#allocation8 + $0xc0] sm:$0xff]
    %v298 = vld [vmem:[#allocation8 + $0xc8] sm:$0xff]
    %v299 = vld [vmem:[#allocation8 + $0xd0] sm:$0xff]
    %v300 = vld [vmem:[#allocation8 + $0xd8] sm:$0xff]
    %v301 = vld [vmem:[#allocation8 + $0xe0] sm:$0xff]
    %v302 = vld [vmem:[#allocation8 + $0xe8] sm:$0xff]
    %v303 = vld [vmem:[#allocation8 + $0xf0] sm:$0xff]
    %v304 = vld [vmem:[#allocation8 + $0xf8] sm:$0xff]
    %v337 = vunpack.c.l.b16 %v273
    %v338 = vunpack.c.h.b16 %v273
    %v339 = vunpack.c.l.b16 %v274
    %v340 = vunpack.c.h.b16 %v274
    %v341 = vunpack.c.l.b16 %v275
    %v342 = vunpack.c.h.b16 %v275
    %v343 = vunpack.c.l.b16 %v276
    %v344 = vunpack.c.h.b16 %v276
    %v345 = vunpack.c.l.b16 %v277
    %v346 = vunpack.c.h.b16 %v277
    %v347 = vunpack.c.l.b16 %v278
    %v348 = vunpack.c.h.b16 %v278
    %v349 = vunpack.c.l.b16 %v279
    %v350 = vunpack.c.h.b16 %v279
    %v351 = vunpack.c.l.b16 %v280
    %v352 = vunpack.c.h.b16 %v280
    %v353 = vunpack.c.l.b16 %v281
    %v354 = vunpack.c.h.b16 %v281
    %v355 = vunpack.c.l.b16 %v282
    %v356 = vunpack.c.h.b16 %v282
    %v357 = vunpack.c.l.b16 %v283
    %v358 = vunpack.c.h.b16 %v283
    %v359 = vunpack.c.l.b16 %v284
    %v360 = vunpack.c.h.b16 %v284
    %v361 = vunpack.c.l.b16 %v285
    %v362 = vunpack.c.h.b16 %v285
    %v363 = vunpack.c.l.b16 %v286
    %v364 = vunpack.c.h.b16 %v286
    %v365 = vunpack.c.l.b16 %v287
    %v366 = vunpack.c.h.b16 %v287
    %v367 = vunpack.c.l.b16 %v288
    %v368 = vunpack.c.h.b16 %v288
    %v369 = vunpack.c.l.b16 %v289
    %v370 = vunpack.c.h.b16 %v289
    %v371 = vunpack.c.l.b16 %v290
    %v372 = vunpack.c.h.b16 %v290
    %v373 = vunpack.c.l.b16 %v291
    %v374 = vunpack.c.h.b16 %v291
    %v375 = vunpack.c.l.b16 %v292
    %v376 = vunpack.c.h.b16 %v292
    %v377 = vunpack.c.l.b16 %v293
    %v378 = vunpack.c.h.b16 %v293
    %v379 = vunpack.c.l.b16 %v294
    %v380 = vunpack.c.h.b16 %v294
    %v381 = vunpack.c.l.b16 %v295
    %v382 = vunpack.c.h.b16 %v295
    %v383 = vunpack.c.l.b16 %v296
    %v384 = vunpack.c.h.b16 %v296
    %v385 = vunpack.c.l.b16 %v297
    %v386 = vunpack.c.h.b16 %v297
    %v387 = vunpack.c.l.b16 %v298
    %v388 = vunpack.c.h.b16 %v298
    %v389 = vunpack.c.l.b16 %v299
    %v390 = vunpack.c.h.b16 %v299
    %v391 = vunpack.c.l.b16 %v300
    %v392 = vunpack.c.h.b16 %v300
    %v393 = vunpack.c.l.b16 %v301
    %v394 = vunpack.c.h.b16 %v301
    %v395 = vunpack.c.l.b16 %v302
    %v396 = vunpack.c.h.b16 %v302
    %v397 = vunpack.c.l.b16 %v303
    %v398 = vunpack.c.h.b16 %v303
    %v399 = vunpack.c.l.b16 %v304
    %v400 = vunpack.c.h.b16 %v304
    %v401 = vpack.c.b16 %v339, %v337
    %v402 = vpack.c.b16 %v340, %v338
    %v403 = vpack.c.b16 %v343, %v341
    %v404 = vpack.c.b16 %v344, %v342
    %v405 = vpack.c.b16 %v347, %v345
    %v406 = vpack.c.b16 %v348, %v346
    %v407 = vpack.c.b16 %v351, %v349
    %v408 = vpack.c.b16 %v352, %v350
    %v409 = vpack.c.b16 %v355, %v353
    %v410 = vpack.c.b16 %v356, %v354
    %v411 = vpack.c.b16 %v359, %v357
    %v412 = vpack.c.b16 %v360, %v358
    %v413 = vpack.c.b16 %v363, %v361
    %v414 = vpack.c.b16 %v364, %v362
    %v415 = vpack.c.b16 %v367, %v365
    %v416 = vpack.c.b16 %v368, %v366
    %v417 = vpack.c.b16 %v371, %v369
    %v418 = vpack.c.b16 %v372, %v370
    %v419 = vpack.c.b16 %v375, %v373
    %v420 = vpack.c.b16 %v376, %v374
    %v421 = vpack.c.b16 %v379, %v377
    %v422 = vpack.c.b16 %v380, %v378
    %v423 = vpack.c.b16 %v383, %v381
    %v424 = vpack.c.b16 %v384, %v382
    %v425 = vpack.c.b16 %v387, %v385
    %v426 = vpack.c.b16 %v388, %v386
    %v427 = vpack.c.b16 %v391, %v389
    %v428 = vpack.c.b16 %v392, %v390
    %v429 = vpack.c.b16 %v395, %v393
    %v430 = vpack.c.b16 %v396, %v394
    %v431 = vpack.c.b16 %v399, %v397
    %v432 = vpack.c.b16 %v400, %v398
    %465 = vmatprep.subr.bf16.mxu0 %v402
    %466 = vmatpush1.bf16.msra.mxu0 %v401
    %467 = vmatprep.subr.bf16.mxu0 %v404
    %468 = vmatpush1.bf16.msra.mxu0 %v403
    %469 = vmatprep.subr.bf16.mxu0 %v406
    %470 = vmatpush1.bf16.msra.mxu0 %v405
    %471 = vmatprep.subr.bf16.mxu0 %v408
    %472 = vmatpush1.bf16.msra.mxu0 %v407
    %473 = vmatprep.subr.bf16.mxu0 %v410
    %474 = vmatpush1.bf16.msra.mxu0 %v409
    %475 = vmatprep.subr.bf16.mxu0 %v412
    %476 = vmatpush1.bf16.msra.mxu0 %v411
    %477 = vmatprep.subr.bf16.mxu0 %v414
    %478 = vmatpush1.bf16.msra.mxu0 %v413
    %479 = vmatprep.subr.bf16.mxu0 %v416
    %480 = vmatpush1.bf16.msra.mxu0 %v415
    %481 = vmatprep.subr.bf16.mxu0 %v418
    %482 = vmatpush1.bf16.msra.mxu0 %v417
    %483 = vmatprep.subr.bf16.mxu0 %v420
    %484 = vmatpush1.bf16.msra.mxu0 %v419
    %485 = vmatprep.subr.bf16.mxu0 %v422
    %486 = vmatpush1.bf16.msra.mxu0 %v421
    %487 = vmatprep.subr.bf16.mxu0 %v424
    %488 = vmatpush1.bf16.msra.mxu0 %v423
    %489 = vmatprep.subr.bf16.mxu0 %v426
    %490 = vmatpush1.bf16.msra.mxu0 %v425
    %491 = vmatprep.subr.bf16.mxu0 %v428
    %492 = vmatpush1.bf16.msra.mxu0 %v427
    %493 = vmatprep.subr.bf16.mxu0 %v430
    %494 = vmatpush1.bf16.msra.mxu0 %v429
    %495 = vmatprep.subr.bf16.mxu0 %v432
    %496 = vmatpush1.bf16.msra.mxu0 %v431
    %497 = vmatprep.mubr.bf16.mxu0 %v194
    %498 = vmatmul.mubr.bf16.gmra.mrb[0].mxu0 %v193
    %v499 = vpop.f32.mrb[0].mxu0
    %v500 = vadd.f32 0.0, %v499
    %v501 = vpop.f32.mrb[0].mxu0
    %v502 = vadd.f32 0.0, %v501
    %v503 = vpop.f32.mrb[0].mxu0
    %v504 = vpop.f32.mrb[0].mxu0
    %505 = vdwg.mxu0
    %v538 = vunpack.c.l.b16 %v241
    %v539 = vunpack.c.h.b16 %v241
    %v540 = vunpack.c.l.b16 %v242
    %v541 = vunpack.c.h.b16 %v242
    %v542 = vunpack.c.l.b16 %v243
    %v543 = vunpack.c.h.b16 %v243
    %v544 = vunpack.c.l.b16 %v244
    %v545 = vunpack.c.h.b16 %v244
    %v546 = vunpack.c.l.b16 %v245
    %v547 = vunpack.c.h.b16 %v245
    %v548 = vunpack.c.l.b16 %v246
    %v549 = vunpack.c.h.b16 %v246
    %v550 = vunpack.c.l.b16 %v247
    %v551 = vunpack.c.h.b16 %v247
    %v552 = vunpack.c.l.b16 %v248
    %v553 = vunpack.c.h.b16 %v248
    %v554 = vunpack.c.l.b16 %v249
    %v555 = vunpack.c.h.b16 %v249
    %v556 = vunpack.c.l.b16 %v250
    %v557 = vunpack.c.h.b16 %v250
    %v558 = vunpack.c.l.b16 %v251
    %v559 = vunpack.c.h.b16 %v251
    %v560 = vunpack.c.l.b16 %v252
    %v561 = vunpack.c.h.b16 %v252
    %v562 = vunpack.c.l.b16 %v253
    %v563 = vunpack.c.h.b16 %v253
    %v564 = vunpack.c.l.b16 %v254
    %v565 = vunpack.c.h.b16 %v254
    %v566 = vunpack.c.l.b16 %v255
    %v567 = vunpack.c.h.b16 %v255
    %v568 = vunpack.c.l.b16 %v256
    %v569 = vunpack.c.h.b16 %v256
    %v570 = vunpack.c.l.b16 %v257
    %v571 = vunpack.c.h.b16 %v257
    %v572 = vunpack.c.l.b16 %v258
    %v573 = vunpack.c.h.b16 %v258
    %v574 = vunpack.c.l.b16 %v259
    %v575 = vunpack.c.h.b16 %v259
    %v576 = vunpack.c.l.b16 %v260
    %v577 = vunpack.c.h.b16 %v260
    %v578 = vunpack.c.l.b16 %v261
    %v579 = vunpack.c.h.b16 %v261
    %v580 = vunpack.c.l.b16 %v262
    %v581 = vunpack.c.h.b16 %v262
    %v582 = vunpack.c.l.b16 %v263
    %v583 = vunpack.c.h.b16 %v263
    %v584 = vunpack.c.l.b16 %v264
    %v585 = vunpack.c.h.b16 %v264
    %v586 = vunpack.c.l.b16 %v265
    %v587 = vunpack.c.h.b16 %v265
    %v588 = vunpack.c.l.b16 %v266
    %v589 = vunpack.c.h.b16 %v266
    %v590 = vunpack.c.l.b16 %v267
    %v591 = vunpack.c.h.b16 %v267
    %v592 = vunpack.c.l.b16 %v268
    %v593 = vunpack.c.h.b16 %v268
    %v594 = vunpack.c.l.b16 %v269
    %v595 = vunpack.c.h.b16 %v269
    %v596 = vunpack.c.l.b16 %v270
    %v597 = vunpack.c.h.b16 %v270
    %v598 = vunpack.c.l.b16 %v271
    %v599 = vunpack.c.h.b16 %v271
    %v600 = vunpack.c.l.b16 %v272
    %v601 = vunpack.c.h.b16 %v272
    %v602 = vpack.c.b16 %v540, %v538
    %v603 = vpack.c.b16 %v541, %v539
    %v604 = vpack.c.b16 %v544, %v542
    %v605 = vpack.c.b16 %v545, %v543
    %v606 = vpack.c.b16 %v548, %v546
    %v607 = vpack.c.b16 %v549, %v547
    %v608 = vpack.c.b16 %v552, %v550
    %v609 = vpack.c.b16 %v553, %v551
    %v610 = vpack.c.b16 %v556, %v554
    %v611 = vpack.c.b16 %v557, %v555
    %v612 = vpack.c.b16 %v560, %v558
    %v613 = vpack.c.b16 %v561, %v559
    %v614 = vpack.c.b16 %v564, %v562
    %v615 = vpack.c.b16 %v565, %v563
    %v616 = vpack.c.b16 %v568, %v566
    %v617 = vpack.c.b16 %v569, %v567
    %v618 = vpack.c.b16 %v572, %v570
    %v619 = vpack.c.b16 %v573, %v571
    %v620 = vpack.c.b16 %v576, %v574
    %v621 = vpack.c.b16 %v577, %v575
    %v622 = vpack.c.b16 %v580, %v578
    %v623 = vpack.c.b16 %v581, %v579
    %v624 = vpack.c.b16 %v584, %v582
    %v625 = vpack.c.b16 %v585, %v583
    %v626 = vpack.c.b16 %v588, %v586
    %v627 = vpack.c.b16 %v589, %v587
    %v628 = vpack.c.b16 %v592, %v590
    %v629 = vpack.c.b16 %v593, %v591
    %v630 = vpack.c.b16 %v596, %v594
    %v631 = vpack.c.b16 %v597, %v595
    %v632 = vpack.c.b16 %v600, %v598
    %v633 = vpack.c.b16 %v601, %v599
    %666 = vmatprep.subr.bf16.mxu0 %v603
    %667 = vmatpush1.bf16.msra.mxu0 %v602
    %668 = vmatprep.subr.bf16.mxu0 %v605
    %669 = vmatpush1.bf16.msra.mxu0 %v604
    %670 = vmatprep.subr.bf16.mxu0 %v607
    %671 = vmatpush1.bf16.msra.mxu0 %v606
    %672 = vmatprep.subr.bf16.mxu0 %v609
    %673 = vmatpush1.bf16.msra.mxu0 %v608
    %674 = vmatprep.subr.bf16.mxu0 %v611
    %675 = vmatpush1.bf16.msra.mxu0 %v610
    %676 = vmatprep.subr.bf16.mxu0 %v613
    %677 = vmatpush1.bf16.msra.mxu0 %v612
    %678 = vmatprep.subr.bf16.mxu0 %v615
    %679 = vmatpush1.bf16.msra.mxu0 %v614
    %680 = vmatprep.subr.bf16.mxu0 %v617
    %681 = vmatpush1.bf16.msra.mxu0 %v616
    %682 = vmatprep.subr.bf16.mxu0 %v619
    %683 = vmatpush1.bf16.msra.mxu0 %v618
    %684 = vmatprep.subr.bf16.mxu0 %v621
    %685 = vmatpush1.bf16.msra.mxu0 %v620
    %686 = vmatprep.subr.bf16.mxu0 %v623
    %687 = vmatpush1.bf16.msra.mxu0 %v622
    %688 = vmatprep.subr.bf16.mxu0 %v625
    %689 = vmatpush1.bf16.msra.mxu0 %v624
    %690 = vmatprep.subr.bf16.mxu0 %v627
    %691 = vmatpush1.bf16.msra.mxu0 %v626
    %692 = vmatprep.subr.bf16.mxu0 %v629
    %693 = vmatpush1.bf16.msra.mxu0 %v628
    %694 = vmatprep.subr.bf16.mxu0 %v631
    %695 = vmatpush1.bf16.msra.mxu0 %v630
    %696 = vmatprep.subr.bf16.mxu0 %v633
    %697 = vmatpush1.bf16.msra.mxu0 %v632
    %698 = vmatprep.mubr.bf16.mxu0 %v146
    %699 = vmatmul.mubr.bf16.gmra.mrb[0].mxu0 %v145
    %v700 = vpop.f32.mrb[0].mxu0
    %v701 = vadd.f32 %v500, %v700
    %v702 = vpop.f32.mrb[0].mxu0
    %v703 = vadd.f32 %v502, %v702
    %v704 = vpop.f32.mrb[0].mxu0
    %v705 = vpop.f32.mrb[0].mxu0
    %706 = vdwg.mxu0
    %v707 = vadd.f32 %v701, %v235
    %v708 = vadd.f32 %v703, %v237
    %v709 = vld [vmem:[#allocation10] sm:$0xff]
    %v710 = vld [vmem:[#allocation10 + $0x8] sm:$0xff]
    %v711 = vadd.f32 %v707, %v709
    %v712 = vadd.f32 %v708, %v710
    %713 = vst [vmem:[#allocation11] sm:$0xff] %v711
    %714 = vst [vmem:[#allocation11 + $0x8] sm:$0xff] %v712
    // Predicated region
    $region42: #{tpu_custom_call.1} parent=1 // pred_check
      _
    $region43: #{tpu_custom_call.1} parent=1 // pred_check_branch
      %716 = sbr.rel (0) target = $region45
    $region44: #{tpu_custom_call.1} parent=1 // pred_region
      %s718 = ssub.s32 256, 256
      %719 = vsyncadd [#allocation4], %s718
      %s721 = sshll.u32 [#allocation11], 4
      %s722 = int_to_ptr.vmem [resolvable:$true] %s721
      %724 = dma.vmem_to_hbm [thread:$0]  %s722, 256, %s5, [#allocation4]
    $region45: #{tpu_custom_call.1} parent=1 // pred_fallthru
      _
    // Predicated region
    $region46: #{tpu_custom_call.1} parent=1 // pred_check
      _
    $region47: #{tpu_custom_call.1} parent=1 // pred_check_branch
      %726 = sbr.rel (0) target = $region49
    $region48: #{tpu_custom_call.1} parent=1 // pred_region
      %727 = dma.done [#allocation4], 256
    $region49: #{tpu_custom_call.1} parent=1 // pred_fallthru
      _
    %728 = vsyncpa [#allocation3], 1
    %729 = vsyncpa [#allocation6], 1
    %730 = vsyncpa [#allocation9], 1
    %731 = vsyncpa [#allocation4], 1

</llo_original>
